<compile_context>
chip_gen: v5e
topology: v5e:2x2
jax: 0.10.0
libtpu: 0.0.40
codegen_flags: <defaults>
</compile_context>

<pallas_src>
import jax
import jax.numpy as jnp
from jax.experimental import pallas as pl
from jax.experimental.pallas import tpu as pltpu


def _disc_rf1_kernel(x_ref, w1m_ref, w1s_ref, b1m_ref, b1s_ref, w2t_ref,
                     noise_ref, o_ref, mus_ref, stds_ref):
    # o block index is constant over the grid -> resident accumulator (P3).
    @pl.when(pl.program_id(0) == 0)
    def _init():
        o_ref[...] = jnp.zeros_like(o_ref)

    x = x_ref[...]  # (B, Din) bf16, resident across all tiles

    # fc1 tile: (B, Din) @ (Din, TN) on the MXU, bf16 in, f32 accumulation.
    mu = jnp.dot(x, w1m_ref[...], preferred_element_type=jnp.float32) + b1m_ref[...]
    st = jnp.dot(x, w1s_ref[...], preferred_element_type=jnp.float32) + b1s_ref[...]

    # LeakyReLU(negative_slope=0.2)
    mu = jnp.where(mu > 0, mu, 0.2 * mu)
    st = jnp.where(st > 0, st, 0.2 * st)
    st = jax.nn.sigmoid(st)

    # reparameterize: enc = randn_like(mu) * sigma + mu (noise from host, bf16)
    enc = noise_ref[...].astype(jnp.float32) * st + mu

    # Partial fc2 for this tile: VPU multiply + XLU lane reduce -> (B, 1).
    o_ref[...] += jnp.sum(enc * w2t_ref[...], axis=-1, keepdims=True)

    mus_ref[...] = mu.astype(mus_ref.dtype)
    stds_ref[...] = st.astype(stds_ref.dtype)


def discriminator_rf1_forward(x, w1, b1, w2, b2, noise, *, tile_n=512):
    """x: (B, Din) bf16; w1: (Din, 2L) bf16 (transposed vs PyTorch); b1: (1, 2L);
    w2: (L, 1); b2: (1, 1); noise: (B, L) bf16.  Returns (o, mus, stds) in f32."""
    B, Din = x.shape
    two_l = w1.shape[1]
    L = two_l // 2
    assert L % tile_n == 0, "latenSize must be a multiple of tile_n"
    n_tiles = L // tile_n

    # Split fc1 weights/bias into mu / std halves (removes in-kernel h[:, :L]
    # slicing) and present w2 as a lane-dense (1, L) row.
    w1_mu, w1_std = w1[:, :L], w1[:, L:]
    b1_mu = b1[:, :L].astype(jnp.float32)
    b1_std = b1[:, L:].astype(jnp.float32)
    w2t = w2.reshape(1, L).astype(jnp.float32)
    x = x.astype(w1.dtype)
    noise = noise.astype(w1.dtype)

    o_part, mus, stds = pl.pallas_call(
        _disc_rf1_kernel,
        grid=(n_tiles,),
        in_specs=[
            pl.BlockSpec((B, Din), lambda i: (0, 0)),       # x (resident)
            pl.BlockSpec((Din, tile_n), lambda i: (0, i)),  # w1_mu tile
            pl.BlockSpec((Din, tile_n), lambda i: (0, i)),  # w1_std tile
            pl.BlockSpec((1, tile_n), lambda i: (0, i)),    # b1_mu tile
            pl.BlockSpec((1, tile_n), lambda i: (0, i)),    # b1_std tile
            pl.BlockSpec((1, tile_n), lambda i: (0, i)),    # w2^T tile
            pl.BlockSpec((B, tile_n), lambda i: (0, i)),    # noise tile
        ],
        out_specs=[
            pl.BlockSpec((B, 1), lambda i: (0, 0)),         # o (fc2 partial)
            pl.BlockSpec((B, tile_n), lambda i: (0, i)),    # mus tile
            pl.BlockSpec((B, tile_n), lambda i: (0, i)),    # stds tile
        ],
        out_shape=(
            jax.ShapeDtypeStruct((B, 1), jnp.float32),
            jax.ShapeDtypeStruct((B, L), jnp.float32),
            jax.ShapeDtypeStruct((B, L), jnp.float32),
        ),
        compiler_params=pltpu.CompilerParams(
            dimension_semantics=("arbitrary",)),
    )(x, w1_mu, w1_std, b1_mu, b1_std, w2t, noise)

    # fc2 bias folded in on the host side (keeps the (1,1) block out of the
    # kernel's vector-load path).
    o = o_part + b2.astype(jnp.float32)
    return o, mus, stds


def _reference_forward(x, w1, b1, w2, b2, noise):
    xf = x.astype(jnp.float32)
    w1f = w1.astype(jnp.float32)
    h = jnp.dot(xf, w1f, precision=jax.lax.Precision.HIGHEST) + b1
    h = jnp.where(h > 0, h, 0.2 * h)
    L = w1.shape[1] // 2
    mus, stds = h[:, :L], jax.nn.sigmoid(h[:, L:])
    enc = noise.astype(jnp.float32) * stds + mus
    o = jnp.dot(enc, w2.astype(jnp.float32),
                precision=jax.lax.Precision.HIGHEST) + b2
    return o, mus, stds


if __name__ == "__main__":
    # Module-consistent small shapes: opt.resSize=96, opt.attSize=32 -> Din=128.
    # latenSize is hard-coded to 2048 in the module.
    B = 8
    res_size, att_size = 96, 32
    Din = res_size + att_size
    L = 2048

    key = jax.random.PRNGKey(0)
    kx, kw1, kw2, kn = jax.random.split(key, 4)

    # weights_init: Linear weights ~ N(0, 0.02), biases = 0.
    # w1 / x / noise stored in bf16 (perf feedback); accumulation is f32.
    x = jax.random.normal(kx, (B, Din), dtype=jnp.float32).astype(jnp.bfloat16)
    w1 = (0.02 * jax.random.normal(kw1, (Din, 2 * L),
                                   dtype=jnp.float32)).astype(jnp.bfloat16)
    b1 = jnp.zeros((1, 2 * L), dtype=jnp.float32)
    w2 = 0.02 * jax.random.normal(kw2, (L, 1), dtype=jnp.float32)
    b2 = jnp.zeros((1, 1), dtype=jnp.float32)
    noise = jax.random.normal(kn, (B, L), dtype=jnp.float32).astype(jnp.bfloat16)

    o, mus, stds = jax.jit(discriminator_rf1_forward)(x, w1, b1, w2, b2, noise)
    jax.block_until_ready((o, mus, stds))

    o_ref, mus_ref, stds_ref = _reference_forward(x, w1, b1, w2, b2, noise)

    assert o.shape == (B, 1) and mus.shape == (B, L) and stds.shape == (B, L)
    assert jnp.allclose(o, o_ref, atol=2e-3, rtol=2e-3)
    assert jnp.allclose(mus, mus_ref, atol=1e-3, rtol=1e-3)
    assert jnp.allclose(stds, stds_ref, atol=1e-3, rtol=1e-3)

    print("KERNEL_OK")
</pallas_src>

<mosaic_0001>
module attributes {stable_mosaic.version = 11 : i64} {
  func.func @_disc_rf1_kernel(%arg0: i32, %arg1: memref<8x128xbf16, #tpu.memory_space<vmem>>, %arg2: memref<128x512xbf16, #tpu.memory_space<vmem>>, %arg3: memref<128x512xbf16, #tpu.memory_space<vmem>>, %arg4: memref<1x512xf32, #tpu.memory_space<vmem>>, %arg5: memref<1x512xf32, #tpu.memory_space<vmem>>, %arg6: memref<1x512xf32, #tpu.memory_space<vmem>>, %arg7: memref<8x512xbf16, #tpu.memory_space<vmem>>, %arg8: memref<8x1xf32, #tpu.memory_space<vmem>>, %arg9: memref<8x512xf32, #tpu.memory_space<vmem>>, %arg10: memref<8x512xf32, #tpu.memory_space<vmem>>) attributes {dimension_semantics = [#tpu.dimension_semantics<arbitrary>], iteration_bounds = array<i64: 4>, scalar_prefetch = 0 : i64, scratch_operands = 0 : i64, tpu.core_type = #tpu.core_type<tc>, window_params = [{pipeline_mode = #tpu.pipeline_mode<synchronous>, transform_indices = @transform_0, window_bounds = array<i64: 8, 128>}, {transform_indices = @transform_1, window_bounds = array<i64: 128, 512>}, {transform_indices = @transform_2, window_bounds = array<i64: 128, 512>}, {transform_indices = @transform_3, window_bounds = array<i64: 1, 512>}, {transform_indices = @transform_4, window_bounds = array<i64: 1, 512>}, {transform_indices = @transform_5, window_bounds = array<i64: 1, 512>}, {transform_indices = @transform_6, window_bounds = array<i64: 8, 512>}, {pipeline_mode = #tpu.pipeline_mode<synchronous>, transform_indices = @transform_7, window_bounds = array<i64: 8, 1>}, {transform_indices = @transform_8, window_bounds = array<i64: 8, 512>}, {transform_indices = @transform_9, window_bounds = array<i64: 8, 512>}]} {
    %c0_i32 = arith.constant 0 : i32
    %0 = arith.cmpi eq, %arg0, %c0_i32 : i32
    %1 = arith.extui %0 : i1 to i32
    %c0_i32_0 = arith.constant 0 : i32
    %2 = arith.cmpi ne, %1, %c0_i32_0 : i32
    scf.if %2 {
      %cst_29 = arith.constant 0.000000e+00 : f32
      %43 = vector.broadcast %cst_29 : f32 to vector<8x1xf32>
      %c0_30 = arith.constant 0 : index
      %c0_31 = arith.constant 0 : index
      %44 = vector.load %arg8[%c0_30, %c0_31] : memref<8x1xf32, #tpu.memory_space<vmem>>, vector<8x1xf32>
      tpu.vector_store %arg8[%c0_30, %c0_31], %43 {strides = array<i32>} : memref<8x1xf32, #tpu.memory_space<vmem>>, vector<8x1xf32>,
    } else {
    }
    %c0 = arith.constant 0 : index
    %c0_1 = arith.constant 0 : index
    %3 = vector.load %arg1[%c0, %c0_1] : memref<8x128xbf16, #tpu.memory_space<vmem>>, vector<8x128xbf16>
    %c0_2 = arith.constant 0 : index
    %c0_3 = arith.constant 0 : index
    %4 = vector.load %arg2[%c0_2, %c0_3] : memref<128x512xbf16, #tpu.memory_space<vmem>>, vector<128x512xbf16>
    %cst = arith.constant dense<0.000000e+00> : vector<8x512xf32>
    %5 = tpu.matmul %3, %4, %cst {dimension_numbers = #tpu.dot_dimension_numbers<[1], [0], [0], [1], [0, 0, 1, 1], [], []>} : vector<8x128xbf16>, vector<128x512xbf16>, vector<8x512xf32> -> vector<8x512xf32>
    %c0_4 = arith.constant 0 : index
    %c0_5 = arith.constant 0 : index
    %6 = vector.load %arg4[%c0_4, %c0_5] : memref<1x512xf32, #tpu.memory_space<vmem>>, vector<1x512xf32>
    %7 = vector.broadcast %6 : vector<1x512xf32> to vector<8x512xf32>
    %8 = arith.addf %5, %7 : vector<8x512xf32>
    %c0_6 = arith.constant 0 : index
    %c0_7 = arith.constant 0 : index
    %9 = vector.load %arg3[%c0_6, %c0_7] : memref<128x512xbf16, #tpu.memory_space<vmem>>, vector<128x512xbf16>
    %cst_8 = arith.constant dense<0.000000e+00> : vector<8x512xf32>
    %10 = tpu.matmul %3, %9, %cst_8 {dimension_numbers = #tpu.dot_dimension_numbers<[1], [0], [0], [1], [0, 0, 1, 1], [], []>} : vector<8x128xbf16>, vector<128x512xbf16>, vector<8x512xf32> -> vector<8x512xf32>
    %c0_9 = arith.constant 0 : index
    %c0_10 = arith.constant 0 : index
    %11 = vector.load %arg5[%c0_9, %c0_10] : memref<1x512xf32, #tpu.memory_space<vmem>>, vector<1x512xf32>
    %12 = vector.broadcast %11 : vector<1x512xf32> to vector<8x512xf32>
    %13 = arith.addf %10, %12 : vector<8x512xf32>
    %cst_11 = arith.constant 0.000000e+00 : f32
    %14 = vector.broadcast %cst_11 : f32 to vector<8x512xf32>
    %15 = arith.cmpf ogt, %8, %14 : vector<8x512xf32>
    %cst_12 = arith.constant 2.000000e-01 : f32
    %16 = vector.broadcast %cst_12 : f32 to vector<8x512xf32>
    %17 = arith.mulf %16, %8 : vector<8x512xf32>
    %18 = arith.select %15, %8, %17 : vector<8x512xi1>, vector<8x512xf32>
    %cst_13 = arith.constant 0.000000e+00 : f32
    %19 = vector.broadcast %cst_13 : f32 to vector<8x512xf32>
    %20 = arith.cmpf ogt, %13, %19 : vector<8x512xf32>
    %cst_14 = arith.constant 2.000000e-01 : f32
    %21 = vector.broadcast %cst_14 : f32 to vector<8x512xf32>
    %22 = arith.mulf %21, %13 : vector<8x512xf32>
    %23 = arith.select %20, %13, %22 : vector<8x512xi1>, vector<8x512xf32>
    %24 = arith.negf %23 : vector<8x512xf32>
    %25 = math.exp %24 : vector<8x512xf32>
    %cst_15 = arith.constant 1.000000e+00 : f32
    %26 = vector.broadcast %cst_15 : f32 to vector<8x512xf32>
    %27 = arith.addf %26, %25 : vector<8x512xf32>
    %28 = arith.divf %26, %27 : vector<8x512xf32>
    %c0_16 = arith.constant 0 : index
    %c0_17 = arith.constant 0 : index
    %29 = vector.load %arg7[%c0_16, %c0_17] : memref<8x512xbf16, #tpu.memory_space<vmem>>, vector<8x512xbf16>
    %30 = arith.extf %29 : vector<8x512xbf16> to vector<8x512xf32>
    %31 = arith.mulf %30, %28 : vector<8x512xf32>
    %32 = arith.addf %31, %18 : vector<8x512xf32>
    %c0_18 = arith.constant 0 : index
    %c0_19 = arith.constant 0 : index
    %33 = vector.load %arg8[%c0_18, %c0_19] : memref<8x1xf32, #tpu.memory_space<vmem>>, vector<8x1xf32>
    %c0_20 = arith.constant 0 : index
    %c0_21 = arith.constant 0 : index
    %34 = vector.load %arg6[%c0_20, %c0_21] : memref<1x512xf32, #tpu.memory_space<vmem>>, vector<1x512xf32>
    %35 = vector.broadcast %34 : vector<1x512xf32> to vector<8x512xf32>
    %36 = arith.mulf %32, %35 : vector<8x512xf32>
    %cst_22 = arith.constant dense<0.000000e+00> : vector<8xf32>
    %37 = vector.multi_reduction <add>, %36, %cst_22 [1] : vector<8x512xf32> to vector<8xf32>
    %38 = vector.shape_cast %37 : vector<8xf32> to vector<8x1xf32>
    %39 = arith.addf %33, %38 : vector<8x1xf32>
    %c0_23 = arith.constant 0 : index
    %c0_24 = arith.constant 0 : index
    %40 = vector.load %arg8[%c0_23, %c0_24] : memref<8x1xf32, #tpu.memory_space<vmem>>, vector<8x1xf32>
    tpu.vector_store %arg8[%c0_23, %c0_24], %39 {strides = array<i32>} : memref<8x1xf32, #tpu.memory_space<vmem>>, vector<8x1xf32>,
    %c0_25 = arith.constant 0 : index
    %c0_26 = arith.constant 0 : index
    %41 = vector.load %arg9[%c0_25, %c0_26] : memref<8x512xf32, #tpu.memory_space<vmem>>, vector<8x512xf32>
    tpu.vector_store %arg9[%c0_25, %c0_26], %18 {strides = array<i32>} : memref<8x512xf32, #tpu.memory_space<vmem>>, vector<8x512xf32>,
    %c0_27 = arith.constant 0 : index
    %c0_28 = arith.constant 0 : index
    %42 = vector.load %arg10[%c0_27, %c0_28] : memref<8x512xf32, #tpu.memory_space<vmem>>, vector<8x512xf32>
    tpu.vector_store %arg10[%c0_27, %c0_28], %28 {strides = array<i32>} : memref<8x512xf32, #tpu.memory_space<vmem>>, vector<8x512xf32>,
    return
  }
  func.func @transform_0(%arg0: i32) -> (i32, i32) {
    %c0_i32 = arith.constant 0 : i32
    %c0_i32_0 = arith.constant 0 : i32
    %c0_i32_1 = arith.constant 0 : i32
    return %c0_i32, %c0_i32_0 : i32, i32
  }
  func.func @transform_1(%arg0: i32) -> (i32, i32) {
    %c0_i32 = arith.constant 0 : i32
    %c0_i32_0 = arith.constant 0 : i32
    return %c0_i32, %arg0 : i32, i32
  }
  func.func @transform_2(%arg0: i32) -> (i32, i32) {
    %c0_i32 = arith.constant 0 : i32
    %c0_i32_0 = arith.constant 0 : i32
    return %c0_i32, %arg0 : i32, i32
  }
  func.func @transform_3(%arg0: i32) -> (i32, i32) {
    %c0_i32 = arith.constant 0 : i32
    %c0_i32_0 = arith.constant 0 : i32
    return %c0_i32, %arg0 : i32, i32
  }
  func.func @transform_4(%arg0: i32) -> (i32, i32) {
    %c0_i32 = arith.constant 0 : i32
    %c0_i32_0 = arith.constant 0 : i32
    return %c0_i32, %arg0 : i32, i32
  }
  func.func @transform_5(%arg0: i32) -> (i32, i32) {
    %c0_i32 = arith.constant 0 : i32
    %c0_i32_0 = arith.constant 0 : i32
    return %c0_i32, %arg0 : i32, i32
  }
  func.func @transform_6(%arg0: i32) -> (i32, i32) {
    %c0_i32 = arith.constant 0 : i32
    %c0_i32_0 = arith.constant 0 : i32
    return %c0_i32, %arg0 : i32, i32
  }
  func.func @transform_7(%arg0: i32) -> (i32, i32) {
    %c0_i32 = arith.constant 0 : i32
    %c0_i32_0 = arith.constant 0 : i32
    %c0_i32_1 = arith.constant 0 : i32
    return %c0_i32, %c0_i32_0 : i32, i32
  }
  func.func @transform_8(%arg0: i32) -> (i32, i32) {
    %c0_i32 = arith.constant 0 : i32
    %c0_i32_0 = arith.constant 0 : i32
    return %c0_i32, %arg0 : i32, i32
  }
  func.func @transform_9(%arg0: i32) -> (i32, i32) {
    %c0_i32 = arith.constant 0 : i32
    %c0_i32_0 = arith.constant 0 : i32
    return %c0_i32, %arg0 : i32, i32
  }
}

</mosaic_0001>

<llo_original>
// kernel: discriminator_rf1_forward.1
$region0: #{discriminator_rf1_forward.1}
  #allocation0 [shape = 'u32[]', space=smem, size = 0x4, offset = 0x4, fixed_abs, tag = 'smem constant byte address 0x4 - core index']
  #allocation1 [shape = 'u32[72,128]{1,0:T(1,128)}', space=vmem, size = 0x9000, scoped, tag = 'internal scratch']
  %s0 = inlined_call_operand.vmem [shape: bf16[8,128], index: 0, kind: input, shape index: {}]
  %s1 = inlined_call_operand.vmem [shape: bf16[128,2048], index: 1, kind: input, shape index: {}]
  %s2 = inlined_call_operand.vmem [shape: bf16[128,2048], index: 2, kind: input, shape index: {}]
  %s3 = inlined_call_operand.vmem [shape: f32[1,2048], index: 3, kind: input, shape index: {}]
  %s4 = inlined_call_operand.vmem [shape: f32[1,2048], index: 4, kind: input, shape index: {}]
  %s5 = inlined_call_operand.vmem [shape: f32[1,2048], index: 5, kind: input, shape index: {}]
  %s6 = inlined_call_operand.vmem [shape: bf16[8,2048], index: 6, kind: input, shape index: {}]
  %s7 = inlined_call_operand.vmem [shape: f32[8,1], index: 7, kind: output, shape index: {0}]
  %s8 = inlined_call_operand.hbm [shape: f32[8,2048], index: 8, kind: output, shape index: {1}]
  %s9 = inlined_call_operand.hbm [shape: f32[8,2048], index: 9, kind: output, shape index: {2}]
  %10 = xla_tuple %s7, %s8, %s9
  %s11 = sld [smem:[#allocation0]]
  $region127: #{discriminator_rf1_forward.1} parent=0
    _
  %s13 = ssub.s32 1, %s11
  %s14 = scalar_select 0, %s13, %s11
  $region1: #{discriminator_rf1_forward.1} parent=0
    #allocation2 [shape = 'u8[262144]{0}', space=vmem, size = 0x40000, scoped, tag = 'input window, operand 1']
    #allocation3 [shape = 'u8[262144]{0}', space=vmem, size = 0x40000, scoped, tag = 'input window, operand 2']
    #allocation4 [shape = 'u8[32768]{0}', space=vmem, size = 0x8000, scoped, tag = 'output window, operand 1']
    #allocation5 [shape = 's32[2]{0}', space=sflag, size = 0x8, scoped, tag = 'scoped memory for discriminator_rf1_forward.1']
    #allocation6 [shape = 'u8[32768]{0}', space=vmem, size = 0x8000, scoped, tag = 'output window, operand 2']
    #allocation7 [shape = 's32[2]{0}', space=sflag, size = 0x8, scoped, tag = 'scoped memory for discriminator_rf1_forward.1']
    %15 = vsyncpa [#allocation5], 0
    %s16 = scalar_lea.sflag [#allocation5], 1
    %17 = vsyncpa %s16, 0
    %18 = vsyncpa [#allocation7], 0
    %s19 = scalar_lea.sflag [#allocation7], 1
    %20 = vsyncpa %s19, 0
    loop: start=0, step=1, limit=6
    $region2: #{discriminator_rf1_forward.1} parent=1 // loop_pre_header
      _
    $region3: #{discriminator_rf1_forward.1} parent=1 // loop_header
      %s22 = sphi 0, %s26
      %p23 = scmp.ge.s32.totalorder %s22, 6
      %s30 = sphi 0, %s30
      %s32 = sphi 0, %s30
      %s33 = sphi 0, %s32
      %s47 = sphi 0, %s33
      %s53 = sphi 0, %s55
      %s56 = sphi 0, %s53
      %s57 = sphi 0, %s56
      %s73 = sphi 0, %s57
      %s79 = sphi 0, %s81
      %s82 = sphi 0, %s79
      %s83 = sphi 0, %s82
      %s99 = sphi 0, %s83
      %s105 = sphi 0, %s107
      %s108 = sphi 0, %s105
      %s109 = sphi 0, %s108
      %s125 = sphi 0, %s109
      %s131 = sphi 0, %s133
      %s134 = sphi 0, %s131
      %s135 = sphi 0, %s134
      %s151 = sphi 0, %s135
      %s157 = sphi 0, %s159
      %s160 = sphi 0, %s157
      %s161 = sphi 0, %s160
      %s177 = sphi 0, %s161
      %s183 = sphi 0, %s185
      %s186 = sphi 0, %s183
      %s187 = sphi 0, %s186
      %s203 = sphi 0, %s187
      %s207 = sphi 0, %s207
      %s209 = sphi 0, %s207
      %s210 = sphi 0, %s209
      %s224 = sphi 0, %s210
      %s230 = sphi 0, %s232
      %s233 = sphi 0, %s230
      %s234 = sphi 0, %s233
      %s250 = sphi 0, %s234
      %s256 = sphi 0, %s258
      %s259 = sphi 0, %s256
      %s260 = sphi 0, %s259
      %s276 = sphi 0, %s260
    $region4: #{discriminator_rf1_forward.1} parent=1 // loop_header_branch
      %25 = sbr.rel (%p23) target = $region8
    $region5: #{discriminator_rf1_forward.1} parent=1 // loop_body
      %s27 = ssub.s32 %s22, 1
      %s28 = ssub.s32 %s22, 2
      %s29 = sadd.s32 %s22, 1
      %s31 = sadd.s32 %s30, 1
      %p34 = scmp.eq.s32.totalorder %s22, 3
      %p35 = scmp.ne.s32.totalorder %s30, %s32
      %p36 = scmp.eq.s32.totalorder %s22, 0
      %p37 = por %p35, %p36
      %p38 = scmp.ne.s32.totalorder %s30, %s32
      %p39 = scmp.eq.s32.totalorder %s27, 3
      %p40 = por %p38, %p39
      %p41 = scmp.ne.s32.totalorder %s32, %s33
      %p42 = scmp.eq.s32.totalorder %s27, 0
      %p43 = por %p41, %p42
      %p44 = scmp.ne.s32.totalorder %s32, %s33
      %p45 = scmp.eq.s32.totalorder %s28, 3
      %p46 = por %p44, %p45
      %p48 = scmp.ne.s32.totalorder %s33, %s47
      %p49 = scmp.eq.s32.totalorder %s28, 0
      %p50 = por %p48, %p49
      %s51 = ssub.s32 %s22, %s29
      %p52 = scmp.eq.s32.totalorder %s51, 0
      %s54 = sadd.s32 %s53, 1
      %s55 = scalar_select %p52, %s53, %s54
      %p58 = pneg %p52
      %p59 = scmp.eq.s32.totalorder %s22, 3
      %p60 = por %p58, %p59
      %p61 = scmp.ne.s32.totalorder %s53, %s56
      %p62 = scmp.eq.s32.totalorder %s22, 0
      %p63 = por %p61, %p62
      %p64 = scmp.ne.s32.totalorder %s53, %s56
      %p65 = scmp.eq.s32.totalorder %s27, 3
      %p66 = por %p64, %p65
      %p67 = scmp.ne.s32.totalorder %s56, %s57
      %p68 = scmp.eq.s32.totalorder %s27, 0
      %p69 = por %p67, %p68
      %p70 = scmp.ne.s32.totalorder %s56, %s57
      %p71 = scmp.eq.s32.totalorder %s28, 3
      %p72 = por %p70, %p71
      %p74 = scmp.ne.s32.totalorder %s57, %s73
      %p75 = scmp.eq.s32.totalorder %s28, 0
      %p76 = por %p74, %p75
      %s77 = ssub.s32 %s22, %s29
      %p78 = scmp.eq.s32.totalorder %s77, 0
      %s80 = sadd.s32 %s79, 1
      %s81 = scalar_select %p78, %s79, %s80
      %p84 = pneg %p78
      %p85 = scmp.eq.s32.totalorder %s22, 3
      %p86 = por %p84, %p85
      %p87 = scmp.ne.s32.totalorder %s79, %s82
      %p88 = scmp.eq.s32.totalorder %s22, 0
      %p89 = por %p87, %p88
      %p90 = scmp.ne.s32.totalorder %s79, %s82
      %p91 = scmp.eq.s32.totalorder %s27, 3
      %p92 = por %p90, %p91
      %p93 = scmp.ne.s32.totalorder %s82, %s83
      %p94 = scmp.eq.s32.totalorder %s27, 0
      %p95 = por %p93, %p94
      %p96 = scmp.ne.s32.totalorder %s82, %s83
      %p97 = scmp.eq.s32.totalorder %s28, 3
      %p98 = por %p96, %p97
      %p100 = scmp.ne.s32.totalorder %s83, %s99
      %p101 = scmp.eq.s32.totalorder %s28, 0
      %p102 = por %p100, %p101
      %s103 = ssub.s32 %s22, %s29
      %p104 = scmp.eq.s32.totalorder %s103, 0
      %s106 = sadd.s32 %s105, 1
      %s107 = scalar_select %p104, %s105, %s106
      %p110 = pneg %p104
      %p111 = scmp.eq.s32.totalorder %s22, 3
      %p112 = por %p110, %p111
      %p113 = scmp.ne.s32.totalorder %s105, %s108
      %p114 = scmp.eq.s32.totalorder %s22, 0
      %p115 = por %p113, %p114
      %p116 = scmp.ne.s32.totalorder %s105, %s108
      %p117 = scmp.eq.s32.totalorder %s27, 3
      %p118 = por %p116, %p117
      %p119 = scmp.ne.s32.totalorder %s108, %s109
      %p120 = scmp.eq.s32.totalorder %s27, 0
      %p121 = por %p119, %p120
      %p122 = scmp.ne.s32.totalorder %s108, %s109
      %p123 = scmp.eq.s32.totalorder %s28, 3
      %p124 = por %p122, %p123
      %p126 = scmp.ne.s32.totalorder %s109, %s125
      %p127 = scmp.eq.s32.totalorder %s28, 0
      %p128 = por %p126, %p127
      %s129 = ssub.s32 %s22, %s29
      %p130 = scmp.eq.s32.totalorder %s129, 0
      %s132 = sadd.s32 %s131, 1
      %s133 = scalar_select %p130, %s131, %s132
      %p136 = pneg %p130
      %p137 = scmp.eq.s32.totalorder %s22, 3
      %p138 = por %p136, %p137
      %p139 = scmp.ne.s32.totalorder %s131, %s134
      %p140 = scmp.eq.s32.totalorder %s22, 0
      %p141 = por %p139, %p140
      %p142 = scmp.ne.s32.totalorder %s131, %s134
      %p143 = scmp.eq.s32.totalorder %s27, 3
      %p144 = por %p142, %p143
      %p145 = scmp.ne.s32.totalorder %s134, %s135
      %p146 = scmp.eq.s32.totalorder %s27, 0
      %p147 = por %p145, %p146
      %p148 = scmp.ne.s32.totalorder %s134, %s135
      %p149 = scmp.eq.s32.totalorder %s28, 3
      %p150 = por %p148, %p149
      %p152 = scmp.ne.s32.totalorder %s135, %s151
      %p153 = scmp.eq.s32.totalorder %s28, 0
      %p154 = por %p152, %p153
      %s155 = ssub.s32 %s22, %s29
      %p156 = scmp.eq.s32.totalorder %s155, 0
      %s158 = sadd.s32 %s157, 1
      %s159 = scalar_select %p156, %s157, %s158
      %p162 = pneg %p156
      %p163 = scmp.eq.s32.totalorder %s22, 3
      %p164 = por %p162, %p163
      %p165 = scmp.ne.s32.totalorder %s157, %s160
      %p166 = scmp.eq.s32.totalorder %s22, 0
      %p167 = por %p165, %p166
      %p168 = scmp.ne.s32.totalorder %s157, %s160
      %p169 = scmp.eq.s32.totalorder %s27, 3
      %p170 = por %p168, %p169
      %p171 = scmp.ne.s32.totalorder %s160, %s161
      %p172 = scmp.eq.s32.totalorder %s27, 0
      %p173 = por %p171, %p172
      %p174 = scmp.ne.s32.totalorder %s160, %s161
      %p175 = scmp.eq.s32.totalorder %s28, 3
      %p176 = por %p174, %p175
      %p178 = scmp.ne.s32.totalorder %s161, %s177
      %p179 = scmp.eq.s32.totalorder %s28, 0
      %p180 = por %p178, %p179
      %s181 = ssub.s32 %s22, %s29
      %p182 = scmp.eq.s32.totalorder %s181, 0
      %s184 = sadd.s32 %s183, 1
      %s185 = scalar_select %p182, %s183, %s184
      %p188 = pneg %p182
      %p189 = scmp.eq.s32.totalorder %s22, 3
      %p190 = por %p188, %p189
      %p191 = scmp.ne.s32.totalorder %s183, %s186
      %p192 = scmp.eq.s32.totalorder %s22, 0
      %p193 = por %p191, %p192
      %p194 = scmp.ne.s32.totalorder %s183, %s186
      %p195 = scmp.eq.s32.totalorder %s27, 3
      %p196 = por %p194, %p195
      %p197 = scmp.ne.s32.totalorder %s186, %s187
      %p198 = scmp.eq.s32.totalorder %s27, 0
      %p199 = por %p197, %p198
      %p200 = scmp.ne.s32.totalorder %s186, %s187
      %p201 = scmp.eq.s32.totalorder %s28, 3
      %p202 = por %p200, %p201
      %p204 = scmp.ne.s32.totalorder %s187, %s203
      %p205 = scmp.eq.s32.totalorder %s28, 0
      %p206 = por %p204, %p205
      %s208 = sadd.s32 %s207, 1
      %p211 = scmp.eq.s32.totalorder %s22, 3
      %p212 = scmp.ne.s32.totalorder %s207, %s209
      %p213 = scmp.eq.s32.totalorder %s22, 0
      %p214 = por %p212, %p213
      %p215 = scmp.ne.s32.totalorder %s207, %s209
      %p216 = scmp.eq.s32.totalorder %s27, 3
      %p217 = por %p215, %p216
      %p218 = scmp.ne.s32.totalorder %s209, %s210
      %p219 = scmp.eq.s32.totalorder %s27, 0
      %p220 = por %p218, %p219
      %p221 = scmp.ne.s32.totalorder %s209, %s210
      %p222 = scmp.eq.s32.totalorder %s28, 3
      %p223 = por %p221, %p222
      %p225 = scmp.ne.s32.totalorder %s210, %s224
      %p226 = scmp.eq.s32.totalorder %s28, 0
      %p227 = por %p225, %p226
      %s228 = ssub.s32 %s22, %s29
      %p229 = scmp.eq.s32.totalorder %s228, 0
      %s231 = sadd.s32 %s230, 1
      %s232 = scalar_select %p229, %s230, %s231
      %p235 = pneg %p229
      %p236 = scmp.eq.s32.totalorder %s22, 3
      %p237 = por %p235, %p236
      %p238 = scmp.ne.s32.totalorder %s230, %s233
      %p239 = scmp.eq.s32.totalorder %s22, 0
      %p240 = por %p238, %p239
      %p241 = scmp.ne.s32.totalorder %s230, %s233
      %p242 = scmp.eq.s32.totalorder %s27, 3
      %p243 = por %p241, %p242
      %p244 = scmp.ne.s32.totalorder %s233, %s234
      %p245 = scmp.eq.s32.totalorder %s27, 0
      %p246 = por %p244, %p245
      %p247 = scmp.ne.s32.totalorder %s233, %s234
      %p248 = scmp.eq.s32.totalorder %s28, 3
      %p249 = por %p247, %p248
      %p251 = scmp.ne.s32.totalorder %s234, %s250
      %p252 = scmp.eq.s32.totalorder %s28, 0
      %p253 = por %p251, %p252
      %s254 = ssub.s32 %s22, %s29
      %p255 = scmp.eq.s32.totalorder %s254, 0
      %s257 = sadd.s32 %s256, 1
      %s258 = scalar_select %p255, %s256, %s257
      %p261 = pneg %p255
      %p262 = scmp.eq.s32.totalorder %s22, 3
      %p263 = por %p261, %p262
      %p264 = scmp.ne.s32.totalorder %s256, %s259
      %p265 = scmp.eq.s32.totalorder %s22, 0
      %p266 = por %p264, %p265
      %p267 = scmp.ne.s32.totalorder %s256, %s259
      %p268 = scmp.eq.s32.totalorder %s27, 3
      %p269 = por %p267, %p268
      %p270 = scmp.ne.s32.totalorder %s259, %s260
      %p271 = scmp.eq.s32.totalorder %s27, 0
      %p272 = por %p270, %p271
      %p273 = scmp.ne.s32.totalorder %s259, %s260
      %p274 = scmp.eq.s32.totalorder %s28, 3
      %p275 = por %p273, %p274
      %p277 = scmp.ne.s32.totalorder %s260, %s276
      %p278 = scmp.eq.s32.totalorder %s28, 0
      %p279 = por %p277, %p278
      %p280 = scmp.le.s32.totalorder 1, %s22
      %p281 = scmp.lt.s32.totalorder %s22, 5
      %p282 = pnand %p280, %p281
      %p283 = pneg %p282
      // Predicated region
      $region9: #{discriminator_rf1_forward.1} parent=5 // pred_check
        _
      $region10: #{discriminator_rf1_forward.1} parent=5 // pred_check_branch
        %285 = sbr.rel (%p282) target = $region12
      $region11: #{discriminator_rf1_forward.1} parent=5 // pred_region
        %s286 = ssub.s32 %s22, 1
        // Predicated region
        $region13: #{discriminator_rf1_forward.1} parent=11 // pred_check
          %p287 = pneg %p43
        $region14: #{discriminator_rf1_forward.1} parent=11 // pred_check_branch
          %289 = sbr.rel (%p287) target = $region16
        $region15: #{discriminator_rf1_forward.1} parent=11 // pred_region
          _
        $region16: #{discriminator_rf1_forward.1} parent=11 // pred_fallthru
          _
      $region12: #{discriminator_rf1_forward.1} parent=5 // pred_fallthru
        _
      %p290 = scmp.lt.s32.totalorder %s22, 4
      // Predicated region
      $region17: #{discriminator_rf1_forward.1} parent=5 // pred_check
        %p291 = pneg %p290
      $region18: #{discriminator_rf1_forward.1} parent=5 // pred_check_branch
        %293 = sbr.rel (%p291) target = $region20
      $region19: #{discriminator_rf1_forward.1} parent=5 // pred_region
        // Predicated region
        $region21: #{discriminator_rf1_forward.1} parent=19 // pred_check
          %p294 = pneg %p63
        $region22: #{discriminator_rf1_forward.1} parent=19 // pred_check_branch
          %296 = sbr.rel (%p294) target = $region24
        $region23: #{discriminator_rf1_forward.1} parent=19 // pred_region
          %s297 = sand.u32 %s53, 1
          %s298 = sand.u32 %s53, 1
          %s299 = smul.addr %s298, 256
          %s300 = scalar_lea.vmem [#allocation2], %s299
          %s301 = smul.u32 4, %s22
          %s302 = smul.addr %s301, 4
          %s303 = scalar_lea.vmem %s1, %s302
          // Predicated region
          $region25: #{discriminator_rf1_forward.1} parent=23 // pred_check
            _
          $region26: #{discriminator_rf1_forward.1} parent=23 // pred_check_branch
            %305 = sbr.rel (0) target = $region28
          $region27: #{discriminator_rf1_forward.1} parent=23 // pred_region
            // Predicated region
            $region29: #{discriminator_rf1_forward.1} parent=27 // pred_check
              _
            $region30: #{discriminator_rf1_forward.1} parent=27 // pred_check_branch
              %307 = sbr.rel (0) target = $region32
            $region31: #{discriminator_rf1_forward.1} parent=27 // pred_region
              loop: start=0, step=1, limit=1
              $region33: #{discriminator_rf1_forward.1} parent=31 // loop_pre_header
                _
              $region34: #{discriminator_rf1_forward.1} parent=31 // loop_header
                %s309 = sphi 0, %s313
                %p310 = scmp.ge.s32.totalorder %s309, 1
                %s314 = sphi %s303, %s303
                %s315 = sphi %s300, %s300
              $region35: #{discriminator_rf1_forward.1} parent=31 // loop_header_branch
                %312 = sbr.rel (%p310) target = $region39
              $region36: #{discriminator_rf1_forward.1} parent=31 // loop_body
                %v316 = vld [vmem:[%s314] sm:$0xff]
                %317 = vst [vmem:[%s315] sm:$0xff] %v316
                %v318 = vld [vmem:[%s314 + $0x8] sm:$0xff]
                %319 = vst [vmem:[%s315 + $0x8] sm:$0xff] %v318
                %v320 = vld [vmem:[%s314 + $0x40] sm:$0xff]
                %321 = vst [vmem:[%s315 + $0x10] sm:$0xff] %v320
                %v322 = vld [vmem:[%s314 + $0x48] sm:$0xff]
                %323 = vst [vmem:[%s315 + $0x18] sm:$0xff] %v322
                %v324 = vld [vmem:[%s314 + $0x80] sm:$0xff]
                %325 = vst [vmem:[%s315 + $0x20] sm:$0xff] %v324
                %v326 = vld [vmem:[%s314 + $0x88] sm:$0xff]
                %327 = vst [vmem:[%s315 + $0x28] sm:$0xff] %v326
                %v328 = vld [vmem:[%s314 + $0xc0] sm:$0xff]
                %329 = vst [vmem:[%s315 + $0x30] sm:$0xff] %v328
                %v330 = vld [vmem:[%s314 + $0xc8] sm:$0xff]
                %331 = vst [vmem:[%s315 + $0x38] sm:$0xff] %v330
                %v332 = vld [vmem:[%s314 + $0x100] sm:$0xff]
                %333 = vst [vmem:[%s315 + $0x40] sm:$0xff] %v332
                %v334 = vld [vmem:[%s314 + $0x108] sm:$0xff]
                %335 = vst [vmem:[%s315 + $0x48] sm:$0xff] %v334
                %v336 = vld [vmem:[%s314 + $0x140] sm:$0xff]
                %337 = vst [vmem:[%s315 + $0x50] sm:$0xff] %v336
                %v338 = vld [vmem:[%s314 + $0x148] sm:$0xff]
                %339 = vst [vmem:[%s315 + $0x58] sm:$0xff] %v338
                %v340 = vld [vmem:[%s314 + $0x180] sm:$0xff]
                %341 = vst [vmem:[%s315 + $0x60] sm:$0xff] %v340
                %v342 = vld [vmem:[%s314 + $0x188] sm:$0xff]
                %343 = vst [vmem:[%s315 + $0x68] sm:$0xff] %v342
                %v344 = vld [vmem:[%s314 + $0x1c0] sm:$0xff]
                %345 = vst [vmem:[%s315 + $0x70] sm:$0xff] %v344
                %v346 = vld [vmem:[%s314 + $0x1c8] sm:$0xff]
                %347 = vst [vmem:[%s315 + $0x78] sm:$0xff] %v346
                %v348 = vld [vmem:[%s314 + $0x200] sm:$0xff]
                %349 = vst [vmem:[%s315 + $0x80] sm:$0xff] %v348
                %v350 = vld [vmem:[%s314 + $0x208] sm:$0xff]
                %351 = vst [vmem:[%s315 + $0x88] sm:$0xff] %v350
                %v352 = vld [vmem:[%s314 + $0x240] sm:$0xff]
                %353 = vst [vmem:[%s315 + $0x90] sm:$0xff] %v352
                %v354 = vld [vmem:[%s314 + $0x248] sm:$0xff]
                %355 = vst [vmem:[%s315 + $0x98] sm:$0xff] %v354
                %v356 = vld [vmem:[%s314 + $0x280] sm:$0xff]
                %357 = vst [vmem:[%s315 + $0xa0] sm:$0xff] %v356
                %v358 = vld [vmem:[%s314 + $0x288] sm:$0xff]
                %359 = vst [vmem:[%s315 + $0xa8] sm:$0xff] %v358
                %v360 = vld [vmem:[%s314 + $0x2c0] sm:$0xff]
                %361 = vst [vmem:[%s315 + $0xb0] sm:$0xff] %v360
                %v362 = vld [vmem:[%s314 + $0x2c8] sm:$0xff]
                %363 = vst [vmem:[%s315 + $0xb8] sm:$0xff] %v362
                %v364 = vld [vmem:[%s314 + $0x300] sm:$0xff]
                %365 = vst [vmem:[%s315 + $0xc0] sm:$0xff] %v364
                %v366 = vld [vmem:[%s314 + $0x308] sm:$0xff]
                %367 = vst [vmem:[%s315 + $0xc8] sm:$0xff] %v366
                %v368 = vld [vmem:[%s314 + $0x340] sm:$0xff]
                %369 = vst [vmem:[%s315 + $0xd0] sm:$0xff] %v368
                %v370 = vld [vmem:[%s314 + $0x348] sm:$0xff]
                %371 = vst [vmem:[%s315 + $0xd8] sm:$0xff] %v370
                %v372 = vld [vmem:[%s314 + $0x380] sm:$0xff]
                %373 = vst [vmem:[%s315 + $0xe0] sm:$0xff] %v372
                %v374 = vld [vmem:[%s314 + $0x388] sm:$0xff]
                %375 = vst [vmem:[%s315 + $0xe8] sm:$0xff] %v374
                %v376 = vld [vmem:[%s314 + $0x3c0] sm:$0xff]
                %377 = vst [vmem:[%s315 + $0xf0] sm:$0xff] %v376
                %v378 = vld [vmem:[%s314 + $0x3c8] sm:$0xff]
                %379 = vst [vmem:[%s315 + $0xf8] sm:$0xff] %v378
              $region37: #{discriminator_rf1_forward.1} parent=31 // loop_footer
                %s313 = sadd.s32 1, %s309
              $region38: #{discriminator_rf1_forward.1} parent=31 // loop_footer_branch
                %308 = sbr.rel target = $region34
              $region39: #{discriminator_rf1_forward.1} parent=31 // loop_exit
                _
            $region32: #{discriminator_rf1_forward.1} parent=27 // pred_fallthru
              _
            // Predicated region
            $region40: #{discriminator_rf1_forward.1} parent=27 // pred_check
              _
            $region41: #{discriminator_rf1_forward.1} parent=27 // pred_check_branch
              %381 = sbr.rel target = $region43
            $region42: #{discriminator_rf1_forward.1} parent=27 // pred_region
              _
            $region43: #{discriminator_rf1_forward.1} parent=27 // pred_fallthru
              _
          $region28: #{discriminator_rf1_forward.1} parent=23 // pred_fallthru
            _
          %382 = vnop
        $region24: #{discriminator_rf1_forward.1} parent=19 // pred_fallthru
          _
        // Predicated region
        $region44: #{discriminator_rf1_forward.1} parent=19 // pred_check
          %p383 = pneg %p89
        $region45: #{discriminator_rf1_forward.1} parent=19 // pred_check_branch
          %385 = sbr.rel (%p383) target = $region47
        $region46: #{discriminator_rf1_forward.1} parent=19 // pred_region
          %s386 = sand.u32 %s79, 1
          %s387 = sand.u32 %s79, 1
          %s388 = smul.addr %s387, 256
          %s389 = scalar_lea.vmem [#allocation3], %s388
          %s390 = smul.u32 4, %s22
          %s391 = smul.addr %s390, 4
          %s392 = scalar_lea.vmem %s2, %s391
          // Predicated region
          $region48: #{discriminator_rf1_forward.1} parent=46 // pred_check
            _
          $region49: #{discriminator_rf1_forward.1} parent=46 // pred_check_branch
            %394 = sbr.rel (0) target = $region51
          $region50: #{discriminator_rf1_forward.1} parent=46 // pred_region
            // Predicated region
            $region52: #{discriminator_rf1_forward.1} parent=50 // pred_check
              _
            $region53: #{discriminator_rf1_forward.1} parent=50 // pred_check_branch
              %396 = sbr.rel (0) target = $region55
            $region54: #{discriminator_rf1_forward.1} parent=50 // pred_region
              loop: start=0, step=1, limit=1
              $region56: #{discriminator_rf1_forward.1} parent=54 // loop_pre_header
                _
              $region57: #{discriminator_rf1_forward.1} parent=54 // loop_header
                %s398 = sphi 0, %s402
                %p399 = scmp.ge.s32.totalorder %s398, 1
                %s403 = sphi %s392, %s392
                %s404 = sphi %s389, %s389
              $region58: #{discriminator_rf1_forward.1} parent=54 // loop_header_branch
                %401 = sbr.rel (%p399) target = $region62
              $region59: #{discriminator_rf1_forward.1} parent=54 // loop_body
                %v405 = vld [vmem:[%s403] sm:$0xff]
                %406 = vst [vmem:[%s404] sm:$0xff] %v405
                %v407 = vld [vmem:[%s403 + $0x8] sm:$0xff]
                %408 = vst [vmem:[%s404 + $0x8] sm:$0xff] %v407
                %v409 = vld [vmem:[%s403 + $0x40] sm:$0xff]
                %410 = vst [vmem:[%s404 + $0x10] sm:$0xff] %v409
                %v411 = vld [vmem:[%s403 + $0x48] sm:$0xff]
                %412 = vst [vmem:[%s404 + $0x18] sm:$0xff] %v411
                %v413 = vld [vmem:[%s403 + $0x80] sm:$0xff]
                %414 = vst [vmem:[%s404 + $0x20] sm:$0xff] %v413
                %v415 = vld [vmem:[%s403 + $0x88] sm:$0xff]
                %416 = vst [vmem:[%s404 + $0x28] sm:$0xff] %v415
                %v417 = vld [vmem:[%s403 + $0xc0] sm:$0xff]
                %418 = vst [vmem:[%s404 + $0x30] sm:$0xff] %v417
                %v419 = vld [vmem:[%s403 + $0xc8] sm:$0xff]
                %420 = vst [vmem:[%s404 + $0x38] sm:$0xff] %v419
                %v421 = vld [vmem:[%s403 + $0x100] sm:$0xff]
                %422 = vst [vmem:[%s404 + $0x40] sm:$0xff] %v421
                %v423 = vld [vmem:[%s403 + $0x108] sm:$0xff]
                %424 = vst [vmem:[%s404 + $0x48] sm:$0xff] %v423
                %v425 = vld [vmem:[%s403 + $0x140] sm:$0xff]
                %426 = vst [vmem:[%s404 + $0x50] sm:$0xff] %v425
                %v427 = vld [vmem:[%s403 + $0x148] sm:$0xff]
                %428 = vst [vmem:[%s404 + $0x58] sm:$0xff] %v427
                %v429 = vld [vmem:[%s403 + $0x180] sm:$0xff]
                %430 = vst [vmem:[%s404 + $0x60] sm:$0xff] %v429
                %v431 = vld [vmem:[%s403 + $0x188] sm:$0xff]
                %432 = vst [vmem:[%s404 + $0x68] sm:$0xff] %v431
                %v433 = vld [vmem:[%s403 + $0x1c0] sm:$0xff]
                %434 = vst [vmem:[%s404 + $0x70] sm:$0xff] %v433
                %v435 = vld [vmem:[%s403 + $0x1c8] sm:$0xff]
                %436 = vst [vmem:[%s404 + $0x78] sm:$0xff] %v435
                %v437 = vld [vmem:[%s403 + $0x200] sm:$0xff]
                %438 = vst [vmem:[%s404 + $0x80] sm:$0xff] %v437
                %v439 = vld [vmem:[%s403 + $0x208] sm:$0xff]
                %440 = vst [vmem:[%s404 + $0x88] sm:$0xff] %v439
                %v441 = vld [vmem:[%s403 + $0x240] sm:$0xff]
                %442 = vst [vmem:[%s404 + $0x90] sm:$0xff] %v441
                %v443 = vld [vmem:[%s403 + $0x248] sm:$0xff]
                %444 = vst [vmem:[%s404 + $0x98] sm:$0xff] %v443
                %v445 = vld [vmem:[%s403 + $0x280] sm:$0xff]
                %446 = vst [vmem:[%s404 + $0xa0] sm:$0xff] %v445
                %v447 = vld [vmem:[%s403 + $0x288] sm:$0xff]
                %448 = vst [vmem:[%s404 + $0xa8] sm:$0xff] %v447
                %v449 = vld [vmem:[%s403 + $0x2c0] sm:$0xff]
                %450 = vst [vmem:[%s404 + $0xb0] sm:$0xff] %v449
                %v451 = vld [vmem:[%s403 + $0x2c8] sm:$0xff]
                %452 = vst [vmem:[%s404 + $0xb8] sm:$0xff] %v451
                %v453 = vld [vmem:[%s403 + $0x300] sm:$0xff]
                %454 = vst [vmem:[%s404 + $0xc0] sm:$0xff] %v453
                %v455 = vld [vmem:[%s403 + $0x308] sm:$0xff]
                %456 = vst [vmem:[%s404 + $0xc8] sm:$0xff] %v455
                %v457 = vld [vmem:[%s403 + $0x340] sm:$0xff]
                %458 = vst [vmem:[%s404 + $0xd0] sm:$0xff] %v457
                %v459 = vld [vmem:[%s403 + $0x348] sm:$0xff]
                %460 = vst [vmem:[%s404 + $0xd8] sm:$0xff] %v459
                %v461 = vld [vmem:[%s403 + $0x380] sm:$0xff]
                %462 = vst [vmem:[%s404 + $0xe0] sm:$0xff] %v461
                %v463 = vld [vmem:[%s403 + $0x388] sm:$0xff]
                %464 = vst [vmem:[%s404 + $0xe8] sm:$0xff] %v463
                %v465 = vld [vmem:[%s403 + $0x3c0] sm:$0xff]
                %466 = vst [vmem:[%s404 + $0xf0] sm:$0xff] %v465
                %v467 = vld [vmem:[%s403 + $0x3c8] sm:$0xff]
                %468 = vst [vmem:[%s404 + $0xf8] sm:$0xff] %v467
              $region60: #{discriminator_rf1_forward.1} parent=54 // loop_footer
                %s402 = sadd.s32 1, %s398
              $region61: #{discriminator_rf1_forward.1} parent=54 // loop_footer_branch
                %397 = sbr.rel target = $region57
              $region62: #{discriminator_rf1_forward.1} parent=54 // loop_exit
                _
            $region55: #{discriminator_rf1_forward.1} parent=50 // pred_fallthru
              _
            // Predicated region
            $region63: #{discriminator_rf1_forward.1} parent=50 // pred_check
              _
            $region64: #{discriminator_rf1_forward.1} parent=50 // pred_check_branch
              %470 = sbr.rel target = $region66
            $region65: #{discriminator_rf1_forward.1} parent=50 // pred_region
              _
            $region66: #{discriminator_rf1_forward.1} parent=50 // pred_fallthru
              _
          $region51: #{discriminator_rf1_forward.1} parent=46 // pred_fallthru
            _
          %471 = vnop
        $region47: #{discriminator_rf1_forward.1} parent=19 // pred_fallthru
          _
        // Predicated region
        $region67: #{discriminator_rf1_forward.1} parent=19 // pred_check
          %p472 = pneg %p115
        $region68: #{discriminator_rf1_forward.1} parent=19 // pred_check_branch
          %474 = sbr.rel (%p472) target = $region70
        $region69: #{discriminator_rf1_forward.1} parent=19 // pred_region
          %s475 = smul.u32 4, %s22
          %p476 = scmp.lt.s32.totalorder %s475, 15
          %s477 = scalar_select %p476, %s475, 15
          %s478 = scalar_lea.vmem %s3, %s477
          %s479 = smul.u32 4, %s22
        $region70: #{discriminator_rf1_forward.1} parent=19 // pred_fallthru
          _
        // Predicated region
        $region71: #{discriminator_rf1_forward.1} parent=19 // pred_check
          %p480 = pneg %p141
        $region72: #{discriminator_rf1_forward.1} parent=19 // pred_check_branch
          %482 = sbr.rel (%p480) target = $region74
        $region73: #{discriminator_rf1_forward.1} parent=19 // pred_region
          %s483 = smul.u32 4, %s22
          %p484 = scmp.lt.s32.totalorder %s483, 15
          %s485 = scalar_select %p484, %s483, 15
          %s486 = scalar_lea.vmem %s4, %s485
          %s487 = smul.u32 4, %s22
        $region74: #{discriminator_rf1_forward.1} parent=19 // pred_fallthru
          _
        // Predicated region
        $region75: #{discriminator_rf1_forward.1} parent=19 // pred_check
          %p488 = pneg %p167
        $region76: #{discriminator_rf1_forward.1} parent=19 // pred_check_branch
          %490 = sbr.rel (%p488) target = $region78
        $region77: #{discriminator_rf1_forward.1} parent=19 // pred_region
          %s491 = smul.u32 4, %s22
          %p492 = scmp.lt.s32.totalorder %s491, 15
          %s493 = scalar_select %p492, %s491, 15
          %s494 = scalar_lea.vmem %s5, %s493
          %s495 = smul.u32 4, %s22
        $region78: #{discriminator_rf1_forward.1} parent=19 // pred_fallthru
          _
        // Predicated region
        $region79: #{discriminator_rf1_forward.1} parent=19 // pred_check
          %p496 = pneg %p193
        $region80: #{discriminator_rf1_forward.1} parent=19 // pred_check_branch
          %498 = sbr.rel (%p496) target = $region82
        $region81: #{discriminator_rf1_forward.1} parent=19 // pred_region
          %s499 = smul.u32 4, %s22
          %p500 = scmp.lt.s32.totalorder %s499, 15
          %s501 = scalar_select %p500, %s499, 15
          %s502 = smul.addr %s501, 4
          %s503 = scalar_lea.vmem %s6, %s502
          %s504 = smul.u32 4, %s22
        $region82: #{discriminator_rf1_forward.1} parent=19 // pred_fallthru
          _
      $region20: #{discriminator_rf1_forward.1} parent=5 // pred_fallthru
        _
      %p505 = scmp.le.s32.totalorder 1, %s22
      %p506 = scmp.lt.s32.totalorder %s22, 5
      %p507 = pnand %p505, %p506
      %p508 = pneg %p507
      // Predicated region
      $region83: #{discriminator_rf1_forward.1} parent=5 // pred_check
        _
      $region84: #{discriminator_rf1_forward.1} parent=5 // pred_check_branch
        %510 = sbr.rel (%p507) target = $region86
      $region85: #{discriminator_rf1_forward.1} parent=5 // pred_region
        %s511 = ssub.s32 %s22, 1
        %s512 = sand.u32 %s56, 1
        %s513 = sand.u32 %s56, 1
        %s514 = smul.addr %s513, 256
        %s515 = scalar_lea.vmem [#allocation2], %s514
        // Predicated region
        $region87: #{discriminator_rf1_forward.1} parent=85 // pred_check
          %p516 = pneg %p69
        $region88: #{discriminator_rf1_forward.1} parent=85 // pred_check_branch
          %518 = sbr.rel (%p516) target = $region90
        $region89: #{discriminator_rf1_forward.1} parent=85 // pred_region
          _
        $region90: #{discriminator_rf1_forward.1} parent=85 // pred_fallthru
          _
        %s519 = sand.u32 %s82, 1
        %s520 = sand.u32 %s82, 1
        %s521 = smul.addr %s520, 256
        %s522 = scalar_lea.vmem [#allocation3], %s521
        // Predicated region
        $region91: #{discriminator_rf1_forward.1} parent=85 // pred_check
          %p523 = pneg %p95
        $region92: #{discriminator_rf1_forward.1} parent=85 // pred_check_branch
          %525 = sbr.rel (%p523) target = $region94
        $region93: #{discriminator_rf1_forward.1} parent=85 // pred_region
          _
        $region94: #{discriminator_rf1_forward.1} parent=85 // pred_fallthru
          _
        %p526 = pneg %p43
        %p527 = pneg %p40
        %s528 = sand.u32 %s56, 1
        %s529 = sand.u32 %s56, 1
        %s530 = smul.addr %s529, 256
        %s531 = scalar_lea.vmem [#allocation2], %s530
        %p532 = pneg %p69
        %p533 = pneg %p66
        %s534 = sand.u32 %s82, 1
        %s535 = sand.u32 %s82, 1
        %s536 = smul.addr %s535, 256
        %s537 = scalar_lea.vmem [#allocation3], %s536
        %p538 = pneg %p95
        %p539 = pneg %p92
        %s540 = smul.u32 4, %s27
        %p541 = scmp.lt.s32.totalorder %s540, 15
        %s542 = scalar_select %p541, %s540, 15
        %s543 = scalar_lea.vmem %s3, %s542
        %p544 = pneg %p121
        %p545 = pneg %p118
        %s546 = smul.u32 4, %s27
        %p547 = scmp.lt.s32.totalorder %s546, 15
        %s548 = scalar_select %p547, %s546, 15
        %s549 = scalar_lea.vmem %s4, %s548
        %p550 = pneg %p147
        %p551 = pneg %p144
        %s552 = smul.u32 4, %s27
        %p553 = scmp.lt.s32.totalorder %s552, 15
        %s554 = scalar_select %p553, %s552, 15
        %s555 = scalar_lea.vmem %s5, %s554
        %p556 = pneg %p173
        %p557 = pneg %p170
        %s558 = smul.u32 4, %s27
        %p559 = scmp.lt.s32.totalorder %s558, 15
        %s560 = scalar_select %p559, %s558, 15
        %s561 = smul.addr %s560, 4
        %s562 = scalar_lea.vmem %s6, %s561
        %p563 = pneg %p199
        %p564 = pneg %p196
        %p565 = pneg %p220
        %p566 = pneg %p217
        %p567 = pneg %p246
        %p568 = pneg %p243
        %s569 = sand.u32 %s233, 1
        %s570 = scalar_lea.sflag [#allocation5], %s569
        %s571 = sand.u32 %s233, 1
        %s572 = smul.addr %s571, 32
        %s573 = scalar_lea.vmem [#allocation4], %s572
        %p574 = pneg %p272
        %p575 = pneg %p269
        %s576 = sand.u32 %s259, 1
        %s577 = scalar_lea.sflag [#allocation7], %s576
        %s578 = sand.u32 %s259, 1
        %s579 = smul.addr %s578, 32
        %s580 = scalar_lea.vmem [#allocation6], %s579
        %s581 = smul.u32 4, %s27
        %s582 = smul.u32 4, %s27
        %s583 = smul.u32 4, %s27
        %p584 = scmp.lt.s32.totalorder %s583, 15
        %s585 = scalar_select %p584, %s583, 15
        %s586 = scalar_lea.vmem %s3, %s585
        %s587 = smul.u32 4, %s27
        %s588 = smul.u32 4, %s27
        %p589 = scmp.lt.s32.totalorder %s588, 15
        %s590 = scalar_select %p589, %s588, 15
        %s591 = scalar_lea.vmem %s4, %s590
        %s592 = smul.u32 4, %s27
        %s593 = smul.u32 4, %s27
        %p594 = scmp.lt.s32.totalorder %s593, 15
        %s595 = scalar_select %p594, %s593, 15
        %s596 = scalar_lea.vmem %s5, %s595
        %s597 = smul.u32 4, %s27
        %s598 = smul.u32 4, %s27
        %p599 = scmp.lt.s32.totalorder %s598, 15
        %s600 = scalar_select %p599, %s598, 15
        %s601 = smul.addr %s600, 4
        %s602 = scalar_lea.vmem %s6, %s601
        %s603 = smul.u32 4, %s27
        %s604 = smul.u32 4, %s27
        %s605 = smul.u32 4, %s27
        %p606 = scmp.eq.s32.totalorder %s27, 0
        // Predicated region
        $region95: #{discriminator_rf1_forward.1} parent=85 // pred_check
          %p607 = pneg %p606
        $region96: #{discriminator_rf1_forward.1} parent=85 // pred_check_branch
          %609 = sbr.rel (%p607) target = $region98
        $region97: #{discriminator_rf1_forward.1} parent=85 // pred_region
          %vm610 = vcmask 7168
          %611 = vst.msk [vmem:[%s7] sm:$0xff] %vm610, 0.0
        $region98: #{discriminator_rf1_forward.1} parent=85 // pred_fallthru
          _
        %v612 = vld [vmem:[%s0] sm:$0xf]
        %v613 = vld [vmem:[%s515] sm:$0xff]
        %v614 = vld [vmem:[%s515 + $0x8] sm:$0xff]
        %v615 = vld [vmem:[%s515 + $0x10] sm:$0xff]
        %v616 = vld [vmem:[%s515 + $0x18] sm:$0xff]
        %v617 = vld [vmem:[%s515 + $0x20] sm:$0xff]
        %v618 = vld [vmem:[%s515 + $0x28] sm:$0xff]
        %v619 = vld [vmem:[%s515 + $0x30] sm:$0xff]
        %v620 = vld [vmem:[%s515 + $0x38] sm:$0xff]
        %v621 = vld [vmem:[%s515 + $0x40] sm:$0xff]
        %v622 = vld [vmem:[%s515 + $0x48] sm:$0xff]
        %v623 = vld [vmem:[%s515 + $0x50] sm:$0xff]
        %v624 = vld [vmem:[%s515 + $0x58] sm:$0xff]
        %v625 = vld [vmem:[%s515 + $0x60] sm:$0xff]
        %v626 = vld [vmem:[%s515 + $0x68] sm:$0xff]
        %v627 = vld [vmem:[%s515 + $0x70] sm:$0xff]
        %v628 = vld [vmem:[%s515 + $0x78] sm:$0xff]
        %v629 = vld [vmem:[%s515 + $0x80] sm:$0xff]
        %v630 = vld [vmem:[%s515 + $0x88] sm:$0xff]
        %v631 = vld [vmem:[%s515 + $0x90] sm:$0xff]
        %v632 = vld [vmem:[%s515 + $0x98] sm:$0xff]
        %v633 = vld [vmem:[%s515 + $0xa0] sm:$0xff]
        %v634 = vld [vmem:[%s515 + $0xa8] sm:$0xff]
        %v635 = vld [vmem:[%s515 + $0xb0] sm:$0xff]
        %v636 = vld [vmem:[%s515 + $0xb8] sm:$0xff]
        %v637 = vld [vmem:[%s515 + $0xc0] sm:$0xff]
        %v638 = vld [vmem:[%s515 + $0xc8] sm:$0xff]
        %v639 = vld [vmem:[%s515 + $0xd0] sm:$0xff]
        %v640 = vld [vmem:[%s515 + $0xd8] sm:$0xff]
        %v641 = vld [vmem:[%s515 + $0xe0] sm:$0xff]
        %v642 = vld [vmem:[%s515 + $0xe8] sm:$0xff]
        %v643 = vld [vmem:[%s515 + $0xf0] sm:$0xff]
        %v644 = vld [vmem:[%s515 + $0xf8] sm:$0xff]
        %v645 = vld [vmem:[%s586] sm:$0xf]
        %v647 = vperm.slane %v645, 0
        %v648 = vperm.slane %v645, 1
        %v649 = vperm.slane %v645, 2
        %v650 = vperm.slane %v645, 3
        %v687 = vunpack.c.l.b16 %v613
        %v688 = vunpack.c.h.b16 %v613
        %v689 = vunpack.c.l.b16 %v614
        %v690 = vunpack.c.h.b16 %v614
        %v691 = vunpack.c.l.b16 %v615
        %v692 = vunpack.c.h.b16 %v615
        %v693 = vunpack.c.l.b16 %v616
        %v694 = vunpack.c.h.b16 %v616
        %v695 = vunpack.c.l.b16 %v617
        %v696 = vunpack.c.h.b16 %v617
        %v697 = vunpack.c.l.b16 %v618
        %v698 = vunpack.c.h.b16 %v618
        %v699 = vunpack.c.l.b16 %v619
        %v700 = vunpack.c.h.b16 %v619
        %v701 = vunpack.c.l.b16 %v620
        %v702 = vunpack.c.h.b16 %v620
        %v703 = vunpack.c.l.b16 %v621
        %v704 = vunpack.c.h.b16 %v621
        %v705 = vunpack.c.l.b16 %v622
        %v706 = vunpack.c.h.b16 %v622
        %v707 = vunpack.c.l.b16 %v623
        %v708 = vunpack.c.h.b16 %v623
        %v709 = vunpack.c.l.b16 %v624
        %v710 = vunpack.c.h.b16 %v624
        %v711 = vunpack.c.l.b16 %v625
        %v712 = vunpack.c.h.b16 %v625
        %v713 = vunpack.c.l.b16 %v626
        %v714 = vunpack.c.h.b16 %v626
        %v715 = vunpack.c.l.b16 %v627
        %v716 = vunpack.c.h.b16 %v627
        %v717 = vunpack.c.l.b16 %v628
        %v718 = vunpack.c.h.b16 %v628
        %v719 = vunpack.c.l.b16 %v629
        %v720 = vunpack.c.h.b16 %v629
        %v721 = vunpack.c.l.b16 %v630
        %v722 = vunpack.c.h.b16 %v630
        %v723 = vunpack.c.l.b16 %v631
        %v724 = vunpack.c.h.b16 %v631
        %v725 = vunpack.c.l.b16 %v632
        %v726 = vunpack.c.h.b16 %v632
        %v727 = vunpack.c.l.b16 %v633
        %v728 = vunpack.c.h.b16 %v633
        %v729 = vunpack.c.l.b16 %v634
        %v730 = vunpack.c.h.b16 %v634
        %v731 = vunpack.c.l.b16 %v635
        %v732 = vunpack.c.h.b16 %v635
        %v733 = vunpack.c.l.b16 %v636
        %v734 = vunpack.c.h.b16 %v636
        %v735 = vunpack.c.l.b16 %v637
        %v736 = vunpack.c.h.b16 %v637
        %v737 = vunpack.c.l.b16 %v638
        %v738 = vunpack.c.h.b16 %v638
        %v739 = vunpack.c.l.b16 %v639
        %v740 = vunpack.c.h.b16 %v639
        %v741 = vunpack.c.l.b16 %v640
        %v742 = vunpack.c.h.b16 %v640
        %v743 = vunpack.c.l.b16 %v641
        %v744 = vunpack.c.h.b16 %v641
        %v745 = vunpack.c.l.b16 %v642
        %v746 = vunpack.c.h.b16 %v642
        %v747 = vunpack.c.l.b16 %v643
        %v748 = vunpack.c.h.b16 %v643
        %v749 = vunpack.c.l.b16 %v644
        %v750 = vunpack.c.h.b16 %v644
        %v751 = vpack.c.b16 %v691, %v687
        %v752 = vpack.c.b16 %v692, %v688
        %v753 = vpack.c.b16 %v693, %v689
        %v754 = vpack.c.b16 %v694, %v690
        %v755 = vpack.c.b16 %v699, %v695
        %v756 = vpack.c.b16 %v700, %v696
        %v757 = vpack.c.b16 %v701, %v697
        %v758 = vpack.c.b16 %v702, %v698
        %v759 = vpack.c.b16 %v707, %v703
        %v760 = vpack.c.b16 %v708, %v704
        %v761 = vpack.c.b16 %v709, %v705
        %v762 = vpack.c.b16 %v710, %v706
        %v763 = vpack.c.b16 %v715, %v711
        %v764 = vpack.c.b16 %v716, %v712
        %v765 = vpack.c.b16 %v717, %v713
        %v766 = vpack.c.b16 %v718, %v714
        %v767 = vpack.c.b16 %v723, %v719
        %v768 = vpack.c.b16 %v724, %v720
        %v769 = vpack.c.b16 %v725, %v721
        %v770 = vpack.c.b16 %v726, %v722
        %v771 = vpack.c.b16 %v731, %v727
        %v772 = vpack.c.b16 %v732, %v728
        %v773 = vpack.c.b16 %v733, %v729
        %v774 = vpack.c.b16 %v734, %v730
        %v775 = vpack.c.b16 %v739, %v735
        %v776 = vpack.c.b16 %v740, %v736
        %v777 = vpack.c.b16 %v741, %v737
        %v778 = vpack.c.b16 %v742, %v738
        %v779 = vpack.c.b16 %v747, %v743
        %v780 = vpack.c.b16 %v748, %v744
        %v781 = vpack.c.b16 %v749, %v745
        %v782 = vpack.c.b16 %v750, %v746
        %815 = vmatpush.bf16.msra.mxu0 %v779
        %816 = vmatpush.bf16.msra.mxu0 %v775
        %817 = vmatpush.bf16.msra.mxu0 %v771
        %818 = vmatpush.bf16.msra.mxu0 %v767
        %819 = vmatpush.bf16.msra.mxu0 %v763
        %820 = vmatpush.bf16.msra.mxu0 %v759
        %821 = vmatpush.bf16.msra.mxu0 %v755
        %822 = vmatpush.bf16.msra.mxu0 %v751
        %823 = vmatmul.bf16.gmra.mxu0 %v612
        %v824 = vpop.f32.mrf.mxu0
        %v825 = vadd.f32 %v647, %v824
        %v826 = vpop.f32.mrf.mxu0
        %827 = vdwg.mxu0
        %828 = vmatpush.bf16.msra.mxu0 %v780
        %829 = vmatpush.bf16.msra.mxu0 %v776
        %830 = vmatpush.bf16.msra.mxu0 %v772
        %831 = vmatpush.bf16.msra.mxu0 %v768
        %832 = vmatpush.bf16.msra.mxu0 %v764
        %833 = vmatpush.bf16.msra.mxu0 %v760
        %834 = vmatpush.bf16.msra.mxu0 %v756
        %835 = vmatpush.bf16.msra.mxu0 %v752
        %836 = vmatmul.bf16.gmra.mxu0 %v612
        %v837 = vpop.f32.mrf.mxu0
        %v838 = vadd.f32 %v648, %v837
        %v839 = vpop.f32.mrf.mxu0
        %840 = vdwg.mxu0
        %841 = vmatpush.bf16.msra.mxu0 %v781
        %842 = vmatpush.bf16.msra.mxu0 %v777
        %843 = vmatpush.bf16.msra.mxu0 %v773
        %844 = vmatpush.bf16.msra.mxu0 %v769
        %845 = vmatpush.bf16.msra.mxu0 %v765
        %846 = vmatpush.bf16.msra.mxu0 %v761
        %847 = vmatpush.bf16.msra.mxu0 %v757
        %848 = vmatpush.bf16.msra.mxu0 %v753
        %849 = vmatmul.bf16.gmra.mxu0 %v612
        %v850 = vpop.f32.mrf.mxu0
        %v851 = vadd.f32 %v649, %v850
        %v852 = vpop.f32.mrf.mxu0
        %853 = vdwg.mxu0
        %854 = vmatpush.bf16.msra.mxu0 %v782
        %855 = vmatpush.bf16.msra.mxu0 %v778
        %856 = vmatpush.bf16.msra.mxu0 %v774
        %857 = vmatpush.bf16.msra.mxu0 %v770
        %858 = vmatpush.bf16.msra.mxu0 %v766
        %859 = vmatpush.bf16.msra.mxu0 %v762
        %860 = vmatpush.bf16.msra.mxu0 %v758
        %861 = vmatpush.bf16.msra.mxu0 %v754
        %862 = vmatmul.bf16.gmra.mxu0 %v612
        %v863 = vpop.f32.mrf.mxu0
        %v864 = vadd.f32 %v650, %v863
        %v865 = vpop.f32.mrf.mxu0
        %866 = vdwg.mxu0
        %v867 = vld [vmem:[%s522] sm:$0xff]
        %v868 = vld [vmem:[%s522 + $0x8] sm:$0xff]
        %v869 = vld [vmem:[%s522 + $0x10] sm:$0xff]
        %v870 = vld [vmem:[%s522 + $0x18] sm:$0xff]
        %v871 = vld [vmem:[%s522 + $0x20] sm:$0xff]
        %v872 = vld [vmem:[%s522 + $0x28] sm:$0xff]
        %v873 = vld [vmem:[%s522 + $0x30] sm:$0xff]
        %v874 = vld [vmem:[%s522 + $0x38] sm:$0xff]
        %v875 = vld [vmem:[%s522 + $0x40] sm:$0xff]
        %v876 = vld [vmem:[%s522 + $0x48] sm:$0xff]
        %v877 = vld [vmem:[%s522 + $0x50] sm:$0xff]
        %v878 = vld [vmem:[%s522 + $0x58] sm:$0xff]
        %v879 = vld [vmem:[%s522 + $0x60] sm:$0xff]
        %v880 = vld [vmem:[%s522 + $0x68] sm:$0xff]
        %v881 = vld [vmem:[%s522 + $0x70] sm:$0xff]
        %v882 = vld [vmem:[%s522 + $0x78] sm:$0xff]
        %v883 = vld [vmem:[%s522 + $0x80] sm:$0xff]
        %v884 = vld [vmem:[%s522 + $0x88] sm:$0xff]
        %v885 = vld [vmem:[%s522 + $0x90] sm:$0xff]
        %v886 = vld [vmem:[%s522 + $0x98] sm:$0xff]
        %v887 = vld [vmem:[%s522 + $0xa0] sm:$0xff]
        %v888 = vld [vmem:[%s522 + $0xa8] sm:$0xff]
        %v889 = vld [vmem:[%s522 + $0xb0] sm:$0xff]
        %v890 = vld [vmem:[%s522 + $0xb8] sm:$0xff]
        %v891 = vld [vmem:[%s522 + $0xc0] sm:$0xff]
        %v892 = vld [vmem:[%s522 + $0xc8] sm:$0xff]
        %v893 = vld [vmem:[%s522 + $0xd0] sm:$0xff]
        %v894 = vld [vmem:[%s522 + $0xd8] sm:$0xff]
        %v895 = vld [vmem:[%s522 + $0xe0] sm:$0xff]
        %v896 = vld [vmem:[%s522 + $0xe8] sm:$0xff]
        %v897 = vld [vmem:[%s522 + $0xf0] sm:$0xff]
        %v898 = vld [vmem:[%s522 + $0xf8] sm:$0xff]
        %v899 = vld [vmem:[%s591] sm:$0xf]
        %v901 = vperm.slane %v899, 0
        %v902 = vperm.slane %v899, 1
        %v903 = vperm.slane %v899, 2
        %v904 = vperm.slane %v899, 3
        %v941 = vunpack.c.l.b16 %v867
        %v942 = vunpack.c.h.b16 %v867
        %v943 = vunpack.c.l.b16 %v868
        %v944 = vunpack.c.h.b16 %v868
        %v945 = vunpack.c.l.b16 %v869
        %v946 = vunpack.c.h.b16 %v869
        %v947 = vunpack.c.l.b16 %v870
        %v948 = vunpack.c.h.b16 %v870
        %v949 = vunpack.c.l.b16 %v871
        %v950 = vunpack.c.h.b16 %v871
        %v951 = vunpack.c.l.b16 %v872
        %v952 = vunpack.c.h.b16 %v872
        %v953 = vunpack.c.l.b16 %v873
        %v954 = vunpack.c.h.b16 %v873
        %v955 = vunpack.c.l.b16 %v874
        %v956 = vunpack.c.h.b16 %v874
        %v957 = vunpack.c.l.b16 %v875
        %v958 = vunpack.c.h.b16 %v875
        %v959 = vunpack.c.l.b16 %v876
        %v960 = vunpack.c.h.b16 %v876
        %v961 = vunpack.c.l.b16 %v877
        %v962 = vunpack.c.h.b16 %v877
        %v963 = vunpack.c.l.b16 %v878
        %v964 = vunpack.c.h.b16 %v878
        %v965 = vunpack.c.l.b16 %v879
        %v966 = vunpack.c.h.b16 %v879
        %v967 = vunpack.c.l.b16 %v880
        %v968 = vunpack.c.h.b16 %v880
        %v969 = vunpack.c.l.b16 %v881
        %v970 = vunpack.c.h.b16 %v881
        %v971 = vunpack.c.l.b16 %v882
        %v972 = vunpack.c.h.b16 %v882
        %v973 = vunpack.c.l.b16 %v883
        %v974 = vunpack.c.h.b16 %v883
        %v975 = vunpack.c.l.b16 %v884
        %v976 = vunpack.c.h.b16 %v884
        %v977 = vunpack.c.l.b16 %v885
        %v978 = vunpack.c.h.b16 %v885
        %v979 = vunpack.c.l.b16 %v886
        %v980 = vunpack.c.h.b16 %v886
        %v981 = vunpack.c.l.b16 %v887
        %v982 = vunpack.c.h.b16 %v887
        %v983 = vunpack.c.l.b16 %v888
        %v984 = vunpack.c.h.b16 %v888
        %v985 = vunpack.c.l.b16 %v889
        %v986 = vunpack.c.h.b16 %v889
        %v987 = vunpack.c.l.b16 %v890
        %v988 = vunpack.c.h.b16 %v890
        %v989 = vunpack.c.l.b16 %v891
        %v990 = vunpack.c.h.b16 %v891
        %v991 = vunpack.c.l.b16 %v892
        %v992 = vunpack.c.h.b16 %v892
        %v993 = vunpack.c.l.b16 %v893
        %v994 = vunpack.c.h.b16 %v893
        %v995 = vunpack.c.l.b16 %v894
        %v996 = vunpack.c.h.b16 %v894
        %v997 = vunpack.c.l.b16 %v895
        %v998 = vunpack.c.h.b16 %v895
        %v999 = vunpack.c.l.b16 %v896
        %v1000 = vunpack.c.h.b16 %v896
        %v1001 = vunpack.c.l.b16 %v897
        %v1002 = vunpack.c.h.b16 %v897
        %v1003 = vunpack.c.l.b16 %v898
        %v1004 = vunpack.c.h.b16 %v898
        %v1005 = vpack.c.b16 %v945, %v941
        %v1006 = vpack.c.b16 %v946, %v942
        %v1007 = vpack.c.b16 %v947, %v943
        %v1008 = vpack.c.b16 %v948, %v944
        %v1009 = vpack.c.b16 %v953, %v949
        %v1010 = vpack.c.b16 %v954, %v950
        %v1011 = vpack.c.b16 %v955, %v951
        %v1012 = vpack.c.b16 %v956, %v952
        %v1013 = vpack.c.b16 %v961, %v957
        %v1014 = vpack.c.b16 %v962, %v958
        %v1015 = vpack.c.b16 %v963, %v959
        %v1016 = vpack.c.b16 %v964, %v960
        %v1017 = vpack.c.b16 %v969, %v965
        %v1018 = vpack.c.b16 %v970, %v966
        %v1019 = vpack.c.b16 %v971, %v967
        %v1020 = vpack.c.b16 %v972, %v968
        %v1021 = vpack.c.b16 %v977, %v973
        %v1022 = vpack.c.b16 %v978, %v974
        %v1023 = vpack.c.b16 %v979, %v975
        %v1024 = vpack.c.b16 %v980, %v976
        %v1025 = vpack.c.b16 %v985, %v981
        %v1026 = vpack.c.b16 %v986, %v982
        %v1027 = vpack.c.b16 %v987, %v983
        %v1028 = vpack.c.b16 %v988, %v984
        %v1029 = vpack.c.b16 %v993, %v989
        %v1030 = vpack.c.b16 %v994, %v990
        %v1031 = vpack.c.b16 %v995, %v991
        %v1032 = vpack.c.b16 %v996, %v992
        %v1033 = vpack.c.b16 %v1001, %v997
        %v1034 = vpack.c.b16 %v1002, %v998
        %v1035 = vpack.c.b16 %v1003, %v999
        %v1036 = vpack.c.b16 %v1004, %v1000
        %1069 = vmatpush.bf16.msra.mxu0 %v1033
        %1070 = vmatpush.bf16.msra.mxu0 %v1029
        %1071 = vmatpush.bf16.msra.mxu0 %v1025
        %1072 = vmatpush.bf16.msra.mxu0 %v1021
        %1073 = vmatpush.bf16.msra.mxu0 %v1017
        %1074 = vmatpush.bf16.msra.mxu0 %v1013
        %1075 = vmatpush.bf16.msra.mxu0 %v1009
        %1076 = vmatpush.bf16.msra.mxu0 %v1005
        %1077 = vmatmul.bf16.gmra.mxu0 %v612
        %v1078 = vpop.f32.mrf.mxu0
        %v1079 = vadd.f32 %v901, %v1078
        %v1080 = vpop.f32.mrf.mxu0
        %1081 = vdwg.mxu0
        %1082 = vmatpush.bf16.msra.mxu0 %v1034
        %1083 = vmatpush.bf16.msra.mxu0 %v1030
        %1084 = vmatpush.bf16.msra.mxu0 %v1026
        %1085 = vmatpush.bf16.msra.mxu0 %v1022
        %1086 = vmatpush.bf16.msra.mxu0 %v1018
        %1087 = vmatpush.bf16.msra.mxu0 %v1014
        %1088 = vmatpush.bf16.msra.mxu0 %v1010
        %1089 = vmatpush.bf16.msra.mxu0 %v1006
        %1090 = vmatmul.bf16.gmra.mxu0 %v612
        %v1091 = vpop.f32.mrf.mxu0
        %v1092 = vadd.f32 %v902, %v1091
        %v1093 = vpop.f32.mrf.mxu0
        %1094 = vdwg.mxu0
        %1095 = vmatpush.bf16.msra.mxu0 %v1035
        %1096 = vmatpush.bf16.msra.mxu0 %v1031
        %1097 = vmatpush.bf16.msra.mxu0 %v1027
        %1098 = vmatpush.bf16.msra.mxu0 %v1023
        %1099 = vmatpush.bf16.msra.mxu0 %v1019
        %1100 = vmatpush.bf16.msra.mxu0 %v1015
        %1101 = vmatpush.bf16.msra.mxu0 %v1011
        %1102 = vmatpush.bf16.msra.mxu0 %v1007
        %1103 = vmatmul.bf16.gmra.mxu0 %v612
        %v1104 = vpop.f32.mrf.mxu0
        %v1105 = vadd.f32 %v903, %v1104
        %v1106 = vpop.f32.mrf.mxu0
        %1107 = vdwg.mxu0
        %1108 = vmatpush.bf16.msra.mxu0 %v1036
        %1109 = vmatpush.bf16.msra.mxu0 %v1032
        %1110 = vmatpush.bf16.msra.mxu0 %v1028
        %1111 = vmatpush.bf16.msra.mxu0 %v1024
        %1112 = vmatpush.bf16.msra.mxu0 %v1020
        %1113 = vmatpush.bf16.msra.mxu0 %v1016
        %1114 = vmatpush.bf16.msra.mxu0 %v1012
        %1115 = vmatpush.bf16.msra.mxu0 %v1008
        %1116 = vmatmul.bf16.gmra.mxu0 %v612
        %v1117 = vpop.f32.mrf.mxu0
        %v1118 = vadd.f32 %v904, %v1117
        %v1119 = vpop.f32.mrf.mxu0
        %1120 = vdwg.mxu0
        %vm1121 = vcmp.gt.f32.partialorder %v825, 0.0
        %vm1122 = vcmp.gt.f32.partialorder %v838, 0.0
        %vm1123 = vcmp.gt.f32.partialorder %v851, 0.0
        %vm1124 = vcmp.gt.f32.partialorder %v864, 0.0
        %v1125 = vmul.f32 %v825, 0.2
        %v1126 = vmul.f32 %v838, 0.2
        %v1127 = vmul.f32 %v851, 0.2
        %v1128 = vmul.f32 %v864, 0.2
        %v1129 = vsel %vm1121, %v825, %v1125
        %v1130 = vsel %vm1122, %v838, %v1126
        %v1131 = vsel %vm1123, %v851, %v1127
        %v1132 = vsel %vm1124, %v864, %v1128
        %vm1133 = vcmp.gt.f32.partialorder %v1079, 0.0
        %vm1134 = vcmp.gt.f32.partialorder %v1092, 0.0
        %vm1135 = vcmp.gt.f32.partialorder %v1105, 0.0
        %vm1136 = vcmp.gt.f32.partialorder %v1118, 0.0
        %v1137 = vmul.f32 %v1079, 0.2
        %v1138 = vmul.f32 %v1092, 0.2
        %v1139 = vmul.f32 %v1105, 0.2
        %v1140 = vmul.f32 %v1118, 0.2
        %v1141 = vsel %vm1133, %v1079, %v1137
        %v1142 = vsel %vm1134, %v1092, %v1138
        %v1143 = vsel %vm1135, %v1105, %v1139
        %v1144 = vsel %vm1136, %v1118, %v1140
        %v1145 = vxor.u32 %v1141, 2147483648
        %v1146 = vxor.u32 %v1142, 2147483648
        %v1147 = vxor.u32 %v1143, 2147483648
        %v1148 = vxor.u32 %v1144, 2147483648
        %v1149 = vmul.f32 %v1145, 1.442695
        %v1150 = vpow.pop %v1149
        %v1151 = vmul.f32 %v1146, 1.442695
        %v1152 = vpow.pop %v1151
        %v1153 = vmul.f32 %v1147, 1.442695
        %v1154 = vpow.pop %v1153
        %v1155 = vmul.f32 %v1148, 1.442695
        %v1156 = vpow.pop %v1155
        %v1157 = vadd.f32 %v1150, 1.0
        %v1158 = vadd.f32 %v1152, 1.0
        %v1159 = vadd.f32 %v1154, 1.0
        %v1160 = vadd.f32 %v1156, 1.0
        %v1161 = vrcp.pop %v1157
        %v1162 = vmul.f32 %v1157, %v1161
        %v1163 = vsub.f32 1.0, %v1162
        %v1164 = vmul.f32 %v1161, %v1163
        %v1165 = vadd.f32 %v1161, %v1164
        %vm1166 = vweird.f32 %v1157
        %vm1167 = vweird.f32 %v1161
        %vm1168 = vmor %vm1166, %vm1167
        %v1169 = vsel %vm1168, %v1161, %v1165
        %v1170 = vand.u32 2147483647, %v1157
        %vm1171 = vcmp.eq.f32.partialorder %v1170, 8.507059e+37
        %v1172 = vand.u32 %v1157, 2147483648
        %v1173 = vor.u32 1.1754944e-38, %v1172
        %v1174 = vsel %vm1171, %v1173, %v1169
        %v1175 = vmul.f32 1.0, %v1174
        %v1176 = vrcp.pop %v1158
        %v1177 = vmul.f32 %v1158, %v1176
        %v1178 = vsub.f32 1.0, %v1177
        %v1179 = vmul.f32 %v1176, %v1178
        %v1180 = vadd.f32 %v1176, %v1179
        %vm1181 = vweird.f32 %v1158
        %vm1182 = vweird.f32 %v1176
        %vm1183 = vmor %vm1181, %vm1182
        %v1184 = vsel %vm1183, %v1176, %v1180
        %v1185 = vand.u32 2147483647, %v1158
        %vm1186 = vcmp.eq.f32.partialorder %v1185, 8.507059e+37
        %v1187 = vand.u32 %v1158, 2147483648
        %v1188 = vor.u32 1.1754944e-38, %v1187
        %v1189 = vsel %vm1186, %v1188, %v1184
        %v1190 = vmul.f32 1.0, %v1189
        %v1191 = vrcp.pop %v1159
        %v1192 = vmul.f32 %v1159, %v1191
        %v1193 = vsub.f32 1.0, %v1192
        %v1194 = vmul.f32 %v1191, %v1193
        %v1195 = vadd.f32 %v1191, %v1194
        %vm1196 = vweird.f32 %v1159
        %vm1197 = vweird.f32 %v1191
        %vm1198 = vmor %vm1196, %vm1197
        %v1199 = vsel %vm1198, %v1191, %v1195
        %v1200 = vand.u32 2147483647, %v1159
        %vm1201 = vcmp.eq.f32.partialorder %v1200, 8.507059e+37
        %v1202 = vand.u32 %v1159, 2147483648
        %v1203 = vor.u32 1.1754944e-38, %v1202
        %v1204 = vsel %vm1201, %v1203, %v1199
        %v1205 = vmul.f32 1.0, %v1204
        %v1206 = vrcp.pop %v1160
        %v1207 = vmul.f32 %v1160, %v1206
        %v1208 = vsub.f32 1.0, %v1207
        %v1209 = vmul.f32 %v1206, %v1208
        %v1210 = vadd.f32 %v1206, %v1209
        %vm1211 = vweird.f32 %v1160
        %vm1212 = vweird.f32 %v1206
        %vm1213 = vmor %vm1211, %vm1212
        %v1214 = vsel %vm1213, %v1206, %v1210
        %v1215 = vand.u32 2147483647, %v1160
        %vm1216 = vcmp.eq.f32.partialorder %v1215, 8.507059e+37
        %v1217 = vand.u32 %v1160, 2147483648
        %v1218 = vor.u32 1.1754944e-38, %v1217
        %v1219 = vsel %vm1216, %v1218, %v1214
        %v1220 = vmul.f32 1.0, %v1219
        %v1221 = vld [vmem:[%s602] sm:$0xff]
        %v1222 = vld [vmem:[%s602 + $0x8] sm:$0xff]
        %v1223 = vunpack.c.l.bf16 %v1221
        %v1224 = vunpack.c.h.bf16 %v1221
        %v1225 = vunpack.c.l.bf16 %v1222
        %v1226 = vunpack.c.h.bf16 %v1222
        %v1227 = vmul.f32 %v1223, %v1175
        %v1228 = vmul.f32 %v1224, %v1190
        %v1229 = vmul.f32 %v1225, %v1205
        %v1230 = vmul.f32 %v1226, %v1220
        %v1231 = vadd.f32 %v1227, %v1129
        %v1232 = vadd.f32 %v1228, %v1130
        %v1233 = vadd.f32 %v1229, %v1131
        %v1234 = vadd.f32 %v1230, %v1132
        %v1235 = vld [vmem:[%s7] sm:$0xff]
        %v1236 = vld [vmem:[%s596] sm:$0xf]
        %v1238 = vperm.slane %v1236, 0
        %v1239 = vperm.slane %v1236, 1
        %v1240 = vperm.slane %v1236, 2
        %v1241 = vperm.slane %v1236, 3
        %v1246 = vmul.f32 %v1231, %v1238
        %v1247 = vmul.f32 %v1232, %v1239
        %v1248 = vmul.f32 %v1233, %v1240
        %v1249 = vmul.f32 %v1234, %v1241
        %v1250 = vadd.f32 %v1246, %v1247
        %v1251 = vadd.f32 %v1250, %v1248
        %v1252 = vadd.f32 %v1251, %v1249
        %1253 = vadd.xlane.f32.xlu0 %v1252
        %v1254 = vpop.xlane.xlu0 %1253
        %v1255 = vadd.f32 %v1235, %v1254
        %vm1256 = vcmask 7168
        %1257 = vst.msk [vmem:[%s7] sm:$0xff] %vm1256, %v1255
        %1258 = vst [vmem:[%s573] sm:$0xff] %v1129
        %1259 = vst [vmem:[%s573 + $0x8] sm:$0xff] %v1130
        %1260 = vst [vmem:[%s573 + $0x10] sm:$0xff] %v1131
        %1261 = vst [vmem:[%s573 + $0x18] sm:$0xff] %v1132
        %1262 = vst [vmem:[%s580] sm:$0xff] %v1175
        %1263 = vst [vmem:[%s580 + $0x8] sm:$0xff] %v1190
        %1264 = vst [vmem:[%s580 + $0x10] sm:$0xff] %v1205
        %1265 = vst [vmem:[%s580 + $0x18] sm:$0xff] %v1220
        %s1266 = sand.u32 %s233, 1
        %s1267 = scalar_lea.sflag [#allocation5], %s1266
        %s1268 = sand.u32 %s233, 1
        %s1269 = smul.addr %s1268, 32
        %s1270 = scalar_lea.vmem [#allocation4], %s1269
        %s1271 = sand.u32 %s259, 1
        %s1272 = scalar_lea.sflag [#allocation7], %s1271
        %s1273 = sand.u32 %s259, 1
        %s1274 = smul.addr %s1273, 32
        %s1275 = scalar_lea.vmem [#allocation6], %s1274
        // Predicated region
        $region99: #{discriminator_rf1_forward.1} parent=85 // pred_check
          %p1276 = pneg %p217
        $region100: #{discriminator_rf1_forward.1} parent=85 // pred_check_branch
          %1278 = sbr.rel (%p1276) target = $region102
        $region101: #{discriminator_rf1_forward.1} parent=85 // pred_region
          _
        $region102: #{discriminator_rf1_forward.1} parent=85 // pred_fallthru
          _
        // Predicated region
        $region103: #{discriminator_rf1_forward.1} parent=85 // pred_check
          %p1279 = pneg %p243
        $region104: #{discriminator_rf1_forward.1} parent=85 // pred_check_branch
          %1281 = sbr.rel (%p1279) target = $region106
        $region105: #{discriminator_rf1_forward.1} parent=85 // pred_region
          %s1282 = smul.u32 4, %s27
          %1284 = vsyncadd %s1267, 0
          %s1285 = smul.addr %s1282, 8
          %s1286 = scalar_lea.hbm %s8, %s1285
          %s1288 = sshll.u32 %s1270, 4
          %s1289 = int_to_ptr.vmem [resolvable:$true] %s1288
          %s1290 = sshll.u32 %s1286, 4
          %s1291 = int_to_ptr.hbm [resolvable:$true] %s1290
          %1293 = dma.vmem_to_hbm [thread:$0]  %s1289, 512, %s1291, %s1267
        $region106: #{discriminator_rf1_forward.1} parent=85 // pred_fallthru
          _
        // Predicated region
        $region107: #{discriminator_rf1_forward.1} parent=85 // pred_check
          %p1294 = pneg %p269
        $region108: #{discriminator_rf1_forward.1} parent=85 // pred_check_branch
          %1296 = sbr.rel (%p1294) target = $region110
        $region109: #{discriminator_rf1_forward.1} parent=85 // pred_region
          %s1297 = smul.u32 4, %s27
          %1299 = vsyncadd %s1272, 0
          %s1300 = smul.addr %s1297, 8
          %s1301 = scalar_lea.hbm %s9, %s1300
          %s1303 = sshll.u32 %s1275, 4
          %s1304 = int_to_ptr.vmem [resolvable:$true] %s1303
          %s1305 = sshll.u32 %s1301, 4
          %s1306 = int_to_ptr.hbm [resolvable:$true] %s1305
          %1308 = dma.vmem_to_hbm [thread:$0]  %s1304, 512, %s1306, %s1272
        $region110: #{discriminator_rf1_forward.1} parent=85 // pred_fallthru
          _
        // Predicated region
        $region111: #{discriminator_rf1_forward.1} parent=85 // pred_check
          %p1309 = pneg %p217
        $region112: #{discriminator_rf1_forward.1} parent=85 // pred_check_branch
          %1311 = sbr.rel (%p1309) target = $region114
        $region113: #{discriminator_rf1_forward.1} parent=85 // pred_region
          _
        $region114: #{discriminator_rf1_forward.1} parent=85 // pred_fallthru
          _
      $region86: #{discriminator_rf1_forward.1} parent=5 // pred_fallthru
        _
      %p1312 = scmp.le.s32.totalorder 2, %s22
      // Predicated region
      $region115: #{discriminator_rf1_forward.1} parent=5 // pred_check
        %p1313 = pneg %p1312
      $region116: #{discriminator_rf1_forward.1} parent=5 // pred_check_branch
        %1315 = sbr.rel (%p1313) target = $region118
      $region117: #{discriminator_rf1_forward.1} parent=5 // pred_region
        %s1316 = ssub.s32 %s22, 2
        // Predicated region
        $region119: #{discriminator_rf1_forward.1} parent=117 // pred_check
          %p1317 = pneg %p249
        $region120: #{discriminator_rf1_forward.1} parent=117 // pred_check_branch
          %1319 = sbr.rel (%p1317) target = $region122
        $region121: #{discriminator_rf1_forward.1} parent=117 // pred_region
          %s1320 = sand.u32 %s234, 1
          %s1321 = scalar_lea.sflag [#allocation5], %s1320
          %s1322 = sand.u32 %s234, 1
          %s1323 = smul.addr %s1322, 32
          %s1324 = scalar_lea.vmem [#allocation4], %s1323
          %1326 = dma.done %s1321, 512
        $region122: #{discriminator_rf1_forward.1} parent=117 // pred_fallthru
          _
        // Predicated region
        $region123: #{discriminator_rf1_forward.1} parent=117 // pred_check
          %p1327 = pneg %p275
        $region124: #{discriminator_rf1_forward.1} parent=117 // pred_check_branch
          %1329 = sbr.rel (%p1327) target = $region126
        $region125: #{discriminator_rf1_forward.1} parent=117 // pred_region
          %s1330 = sand.u32 %s260, 1
          %s1331 = scalar_lea.sflag [#allocation7], %s1330
          %s1332 = sand.u32 %s260, 1
          %s1333 = smul.addr %s1332, 32
          %s1334 = scalar_lea.vmem [#allocation6], %s1333
          %1336 = dma.done %s1331, 512
        $region126: #{discriminator_rf1_forward.1} parent=117 // pred_fallthru
          _
      $region118: #{discriminator_rf1_forward.1} parent=5 // pred_fallthru
        _
    $region6: #{discriminator_rf1_forward.1} parent=1 // loop_footer
      %s26 = sadd.s32 1, %s22
    $region7: #{discriminator_rf1_forward.1} parent=1 // loop_footer_branch
      %21 = sbr.rel target = $region3
    $region8: #{discriminator_rf1_forward.1} parent=1 // loop_exit
      _
    %1337 = vsyncpa [#allocation5], 1
    %s1338 = scalar_lea.sflag [#allocation5], 1
    %1339 = vsyncpa %s1338, 1
    %1340 = vsyncpa [#allocation7], 1
    %s1341 = scalar_lea.sflag [#allocation7], 1
    %1342 = vsyncpa %s1341, 1

</llo_original>
